<compile_context>
chip_gen: v6e
topology: v6e:2x2x1
jax: 0.10.0
libtpu: 0.0.40
codegen_flags: <defaults>
</compile_context>

<pallas_src>
import functools

import jax
import jax.numpy as jnp
from jax.experimental import pallas as pl
from jax.experimental.pallas import tpu as pltpu


def _round_up(x, m):
    return (x + m - 1) // m * m


def _label_smoothing_kernel(x_ref, aux_ref, out_ref, *, n_rows, tile_rows,
                            base, confidence):
    i = pl.program_id(0)

    x = x_ref[...].astype(jnp.float32)          # (TN, V), math in f32
    aux = aux_ref[...]                          # (TN, 3) f32
    x_tgt = aux[:, 0:1]                         # x[n, target[n]]
    x_pad = aux[:, 1:2]                         # x[n, padding_idx]
    valid = aux[:, 2:3]                         # 1.0 iff target[n] != padding_idx

    # Numerically-stable logsumexp and plain sum over the (full-width) class axis.
    # No padded columns exist: the block spans exactly the real classes.
    m = jnp.max(x, axis=1, keepdims=True)
    lse = m + jnp.log(jnp.sum(jnp.exp(x - m), axis=1, keepdims=True))
    sum_x = jnp.sum(x, axis=1, keepdims=True)
    # TODO(synk): for very large vocabularies, tile the class axis with an online
    # logsumexp (and optionally offload sum_x to the idle MXU via a ones-vector
    # dot) so the per-step working set stays inside v7x's 64 MiB VMEM.

    # Closed-form soft-target CE per row; uses base*(size-2) + confidence == 1:
    #   -[ base*(sum_logp - logp_pad - logp_tgt) + confidence*logp_tgt ]
    #     == lse - base*(sum_x - x_pad - x_tgt) - confidence*x_tgt
    per_row = lse - base * (sum_x - x_pad - x_tgt) - confidence * x_tgt

    # Zero rows whose target is padding_idx AND rows of the ragged last tile that
    # lie beyond N (row index from the grid position, not from garbage data).
    row = i * tile_rows + jax.lax.broadcasted_iota(jnp.int32, per_row.shape, 0)
    per_row = jnp.where((row < n_rows) & (valid > 0.5), per_row, 0.0)

    out_ref[...] = per_row


def label_smoothing_loss(x, target, *, size, padding_idx, smoothing=0.0,
                         tile_rows=None):
    """x: (N, size) float logits (f32 or bf16), target: (N,) int — scalar f32 loss."""
    assert x.ndim == 2 and x.shape[1] == size
    assert size > 2, "smoothing / (size - 2) requires size > 2"
    assert 0 <= padding_idx < size
    n = x.shape[0]

    base = smoothing / (size - 2)
    confidence = 1.0 - smoothing

    # O(N) wrapper-side gathers — negligible next to the O(N*size) logits read,
    # and they remove every in-kernel compare/select gather.
    tgt = target.astype(jnp.int32)
    x_tgt = jnp.take_along_axis(x, tgt[:, None], axis=1).astype(jnp.float32)
    x_pad = x[:, padding_idx:padding_idx + 1].astype(jnp.float32)
    valid = (tgt[:, None] != padding_idx).astype(jnp.float32)
    aux = jnp.concatenate([x_tgt, x_pad, valid], axis=1)          # (N, 3) f32

    # Row tile: sublane-aligned for the input dtype (8 f32 / 16 bf16 / 32 int8),
    # sized so the (tn, size) f32 working set is ~4 MiB.
    sub = max(8, 32 // x.dtype.itemsize)
    if tile_rows is None:
        tile_rows = (4 * 1024 * 1024 // 4) // size
    tn = min(int(tile_rows), _round_up(n, sub))
    tn = max(sub, (tn // sub) * sub)
    num_tiles = pl.cdiv(n, tn)

    kernel = functools.partial(
        _label_smoothing_kernel,
        n_rows=n, tile_rows=tn, base=base, confidence=confidence)

    per_row = pl.pallas_call(
        kernel,
        grid=(num_tiles,),
        out_shape=jax.ShapeDtypeStruct((num_tiles * tn, 1), jnp.float32),
        in_specs=[
            # Class axis kept at full array width (legal for any `size`); the row
            # axis is ragged on the last tile and masked in-kernel. No jnp.pad.
            # If xprof ever shows exposed DMA, pipeline_mode=pl.Buffered(3) on this
            # spec is the sweep knob.
            pl.BlockSpec((tn, size), lambda i: (i, 0)),
            pl.BlockSpec((tn, 3), lambda i: (i, 0)),
        ],
        # Disjoint per-tile output blocks -> no accumulator, so the grid axis can
        # be "parallel" (megacore-sharded across v7x's two TensorCores).
        out_specs=pl.BlockSpec((tn, 1), lambda i: (i, 0)),
        compiler_params=pltpu.CompilerParams(
            dimension_semantics=("parallel",),
            vmem_limit_bytes=48 * 1024 * 1024),
    )(x, aux)

    # Masked rows were written as exactly 0, so a plain sum over the (row-padded)
    # per-row losses matches the reference; the mean is over the original N.
    return jnp.sum(per_row) * (1.0 / n)


def _reference(x, target, *, size, padding_idx, smoothing):
    # Pure-JAX reference mirroring the PyTorch module.
    confidence = 1.0 - smoothing
    n = x.shape[0]
    col = jnp.arange(size)[None, :]
    tgt = target[:, None]
    td = jnp.full((n, size), smoothing / (size - 2), jnp.float32)
    td = jnp.where(col == tgt, confidence, td)
    td = td.at[:, padding_idx].set(0.0)
    td = jnp.where(tgt == padding_idx, 0.0, td)
    logp = jax.nn.log_softmax(x.astype(jnp.float32), axis=1)
    return jnp.mean(-jnp.sum(td * logp, axis=1))


if __name__ == "__main__":
    SIZE = 32          # num classes (vocab); class block = full width (no padding)
    PADDING_IDX = 0
    SMOOTHING = 0.1
    N = 20             # not a multiple of the row tile -> exercises the ragged tile

    key = jax.random.PRNGKey(0)
    kx, kt = jax.random.split(key)
    x = jax.random.normal(kx, (N, SIZE), dtype=jnp.float32)
    target = jax.random.randint(kt, (N,), 0, SIZE, dtype=jnp.int32)
    target = target.at[3].set(PADDING_IDX)   # exercise the padding-row mask

    # Small tile forces a multi-tile parallel grid with a ragged last tile (3 x 8 rows).
    loss = label_smoothing_loss(x, target, size=SIZE, padding_idx=PADDING_IDX,
                                smoothing=SMOOTHING, tile_rows=8)
    loss = jax.block_until_ready(loss)
    ref = _reference(x, target, size=SIZE, padding_idx=PADDING_IDX,
                     smoothing=SMOOTHING)
    assert jnp.allclose(loss, ref, atol=1e-5, rtol=1e-5), (loss, ref)

    # Default single-tile path.
    loss_d = label_smoothing_loss(x, target, size=SIZE, padding_idx=PADDING_IDX,
                                  smoothing=SMOOTHING)
    loss_d = jax.block_until_ready(loss_d)
    assert jnp.allclose(loss_d, ref, atol=1e-5, rtol=1e-5), (loss_d, ref)

    # bf16 logits path (half the HBM traffic); 16-row sublane tiles, ragged edge.
    x_bf16 = x.astype(jnp.bfloat16)
    loss_bf16 = label_smoothing_loss(x_bf16, target, size=SIZE,
                                     padding_idx=PADDING_IDX,
                                     smoothing=SMOOTHING, tile_rows=16)
    loss_bf16 = jax.block_until_ready(loss_bf16)
    ref_bf16 = _reference(x_bf16.astype(jnp.float32), target, size=SIZE,
                          padding_idx=PADDING_IDX, smoothing=SMOOTHING)
    assert jnp.allclose(loss_bf16, ref_bf16, atol=1e-4, rtol=1e-4), (loss_bf16, ref_bf16)

    print("KERNEL_OK")
</pallas_src>

<mosaic_0001>
module attributes {stable_mosaic.version = 11 : i64} {
  func.func @_label_smoothing_kernel(%arg0: i32, %arg1: memref<8x32xf32, #tpu.memory_space<vmem>>, %arg2: memref<8x3xf32, #tpu.memory_space<vmem>>, %arg3: memref<8x1xf32, #tpu.memory_space<vmem>>) attributes {dimension_semantics = [#tpu.dimension_semantics<parallel>], iteration_bounds = array<i64: 3>, scalar_prefetch = 0 : i64, scratch_operands = 0 : i64, tpu.core_type = #tpu.core_type<tc>, window_params = [{transform_indices = @transform_0, window_bounds = array<i64: 8, 32>}, {transform_indices = @transform_1, window_bounds = array<i64: 8, 3>}, {transform_indices = @transform_2, window_bounds = array<i64: 8, 1>}]} {
    %c0 = arith.constant 0 : index
    %c0_0 = arith.constant 0 : index
    %0 = vector.load %arg1[%c0, %c0_0] : memref<8x32xf32, #tpu.memory_space<vmem>>, vector<8x32xf32>
    %c0_1 = arith.constant 0 : index
    %c0_2 = arith.constant 0 : index
    %1 = vector.load %arg2[%c0_1, %c0_2] : memref<8x3xf32, #tpu.memory_space<vmem>>, vector<8x3xf32>
    %2 = vector.extract_strided_slice %1 {offsets = [0, 0], sizes = [8, 1], strides = [1, 1]} : vector<8x3xf32> to vector<8x1xf32>
    %3 = vector.extract_strided_slice %1 {offsets = [0, 1], sizes = [8, 1], strides = [1, 1]} : vector<8x3xf32> to vector<8x1xf32>
    %4 = vector.extract_strided_slice %1 {offsets = [0, 2], sizes = [8, 1], strides = [1, 1]} : vector<8x3xf32> to vector<8x1xf32>
    %cst = arith.constant dense<0xFF800000> : vector<8xf32>
    %5 = vector.multi_reduction <maximumf>, %0, %cst [1] : vector<8x32xf32> to vector<8xf32>
    %6 = vector.shape_cast %5 : vector<8xf32> to vector<8x1xf32>
    %7 = vector.broadcast %6 : vector<8x1xf32> to vector<8x32xf32>
    %8 = arith.subf %0, %7 : vector<8x32xf32>
    %9 = math.exp %8 : vector<8x32xf32>
    %cst_3 = arith.constant dense<0.000000e+00> : vector<8xf32>
    %10 = vector.multi_reduction <add>, %9, %cst_3 [1] : vector<8x32xf32> to vector<8xf32>
    %11 = vector.shape_cast %10 : vector<8xf32> to vector<8x1xf32>
    %12 = math.log %11 : vector<8x1xf32>
    %13 = arith.addf %6, %12 : vector<8x1xf32>
    %cst_4 = arith.constant dense<0.000000e+00> : vector<8xf32>
    %14 = vector.multi_reduction <add>, %0, %cst_4 [1] : vector<8x32xf32> to vector<8xf32>
    %15 = vector.shape_cast %14 : vector<8xf32> to vector<8x1xf32>
    %16 = arith.subf %15, %3 : vector<8x1xf32>
    %17 = arith.subf %16, %2 : vector<8x1xf32>
    %cst_5 = arith.constant 0.00333333341 : f32
    %18 = vector.broadcast %cst_5 : f32 to vector<8x1xf32>
    %19 = arith.mulf %18, %17 : vector<8x1xf32>
    %20 = arith.subf %13, %19 : vector<8x1xf32>
    %cst_6 = arith.constant 0.899999976 : f32
    %21 = vector.broadcast %cst_6 : f32 to vector<8x1xf32>
    %22 = arith.mulf %21, %2 : vector<8x1xf32>
    %23 = arith.subf %20, %22 : vector<8x1xf32>
    %c8_i32 = arith.constant 8 : i32
    %24 = arith.muli %arg0, %c8_i32 : i32
    %25 = tpu.iota {dimensions = array<i32: 0>} : vector<8x1xi32>
    %26 = vector.broadcast %24 : i32 to vector<8x1xi32>
    %27 = arith.addi %26, %25 : vector<8x1xi32>
    %c20_i32 = arith.constant 20 : i32
    %28 = vector.broadcast %c20_i32 : i32 to vector<8x1xi32>
    %29 = arith.cmpi slt, %27, %28 : vector<8x1xi32>
    %cst_7 = arith.constant 5.000000e-01 : f32
    %30 = vector.broadcast %cst_7 : f32 to vector<8x1xf32>
    %31 = arith.cmpf ogt, %4, %30 : vector<8x1xf32>
    %32 = arith.andi %29, %31 : vector<8x1xi1>
    %cst_8 = arith.constant 0.000000e+00 : f32
    %33 = vector.broadcast %cst_8 : f32 to vector<8x1xf32>
    %34 = arith.select %32, %23, %33 : vector<8x1xi1>, vector<8x1xf32>
    %c0_9 = arith.constant 0 : index
    %c0_10 = arith.constant 0 : index
    %35 = vector.load %arg3[%c0_9, %c0_10] : memref<8x1xf32, #tpu.memory_space<vmem>>, vector<8x1xf32>
    tpu.vector_store %arg3[%c0_9, %c0_10], %34 {strides = array<i32>} : memref<8x1xf32, #tpu.memory_space<vmem>>, vector<8x1xf32>,
    return
  }
  func.func @transform_0(%arg0: i32) -> (i32, i32) {
    %c0_i32 = arith.constant 0 : i32
    %c0_i32_0 = arith.constant 0 : i32
    return %arg0, %c0_i32 : i32, i32
  }
  func.func @transform_1(%arg0: i32) -> (i32, i32) {
    %c0_i32 = arith.constant 0 : i32
    %c0_i32_0 = arith.constant 0 : i32
    return %arg0, %c0_i32 : i32, i32
  }
  func.func @transform_2(%arg0: i32) -> (i32, i32) {
    %c0_i32 = arith.constant 0 : i32
    %c0_i32_0 = arith.constant 0 : i32
    return %arg0, %c0_i32 : i32, i32
  }
}

</mosaic_0001>

<llo_original>
// kernel: tpu_custom_call.1
$region0: #{tpu_custom_call.1}
  #allocation0 [shape = 'u32[]', space=smem, size = 0x4, offset = 0x4, fixed_abs, tag = 'smem constant byte address 0x4 - core index']
  #allocation1 [shape = 'u32[144,128]{1,0:T(1,128)}', space=vmem, size = 0x12000, scoped, tag = 'internal scratch']
  %s0 = inlined_call_operand.vmem [shape: f32[20,32], index: 0, kind: input, shape index: {}]
  %s1 = inlined_call_operand.vmem [shape: f32[20,3], index: 1, kind: input, shape index: {}]
  %s2 = inlined_call_operand.vmem [shape: f32[24,1], index: 2, kind: output, shape index: {}]
  %s3 = sld [smem:[#allocation0]]
  $region41: #{tpu_custom_call.1} parent=0
    _
  %s5 = ssub.s32 1, %s3
  %s6 = scalar_select 0, %s5, %s3
  loop: start=0, step=1, limit=5
  $region2: #{tpu_custom_call.1} parent=0 // loop_pre_header
    _
  $region3: #{tpu_custom_call.1} parent=0 // loop_header
    %s8 = sphi 0, %s12
    %p9 = scmp.ge.s32.totalorder %s8, 5
    %s18 = sphi 0, %s20
    %s21 = sphi 0, %s18
    %s22 = sphi 0, %s21
    %s38 = sphi 0, %s22
    %s44 = sphi 0, %s46
    %s47 = sphi 0, %s44
    %s48 = sphi 0, %s47
    %s64 = sphi 0, %s48
    %s70 = sphi 0, %s72
    %s73 = sphi 0, %s70
    %s74 = sphi 0, %s73
    %s90 = sphi 0, %s74
  $region4: #{tpu_custom_call.1} parent=0 // loop_header_branch
    %11 = sbr.rel (%p9) target = $region8
  $region5: #{tpu_custom_call.1} parent=0 // loop_body
    %s13 = ssub.s32 %s8, 1
    %s14 = ssub.s32 %s8, 2
    %s15 = sadd.s32 %s8, 1
    %s16 = ssub.s32 %s8, %s15
    %p17 = scmp.eq.s32.totalorder %s16, 0
    %s19 = sadd.s32 %s18, 1
    %s20 = scalar_select %p17, %s18, %s19
    %p23 = pneg %p17
    %p24 = scmp.eq.s32.totalorder %s8, 2
    %p25 = por %p23, %p24
    %p26 = scmp.ne.s32.totalorder %s18, %s21
    %p27 = scmp.eq.s32.totalorder %s8, 0
    %p28 = por %p26, %p27
    %p29 = scmp.ne.s32.totalorder %s18, %s21
    %p30 = scmp.eq.s32.totalorder %s13, 2
    %p31 = por %p29, %p30
    %p32 = scmp.ne.s32.totalorder %s21, %s22
    %p33 = scmp.eq.s32.totalorder %s13, 0
    %p34 = por %p32, %p33
    %p35 = scmp.ne.s32.totalorder %s21, %s22
    %p36 = scmp.eq.s32.totalorder %s14, 2
    %p37 = por %p35, %p36
    %p39 = scmp.ne.s32.totalorder %s22, %s38
    %p40 = scmp.eq.s32.totalorder %s14, 0
    %p41 = por %p39, %p40
    %s42 = ssub.s32 %s8, %s15
    %p43 = scmp.eq.s32.totalorder %s42, 0
    %s45 = sadd.s32 %s44, 1
    %s46 = scalar_select %p43, %s44, %s45
    %p49 = pneg %p43
    %p50 = scmp.eq.s32.totalorder %s8, 2
    %p51 = por %p49, %p50
    %p52 = scmp.ne.s32.totalorder %s44, %s47
    %p53 = scmp.eq.s32.totalorder %s8, 0
    %p54 = por %p52, %p53
    %p55 = scmp.ne.s32.totalorder %s44, %s47
    %p56 = scmp.eq.s32.totalorder %s13, 2
    %p57 = por %p55, %p56
    %p58 = scmp.ne.s32.totalorder %s47, %s48
    %p59 = scmp.eq.s32.totalorder %s13, 0
    %p60 = por %p58, %p59
    %p61 = scmp.ne.s32.totalorder %s47, %s48
    %p62 = scmp.eq.s32.totalorder %s14, 2
    %p63 = por %p61, %p62
    %p65 = scmp.ne.s32.totalorder %s48, %s64
    %p66 = scmp.eq.s32.totalorder %s14, 0
    %p67 = por %p65, %p66
    %s68 = ssub.s32 %s8, %s15
    %p69 = scmp.eq.s32.totalorder %s68, 0
    %s71 = sadd.s32 %s70, 1
    %s72 = scalar_select %p69, %s70, %s71
    %p75 = pneg %p69
    %p76 = scmp.eq.s32.totalorder %s8, 2
    %p77 = por %p75, %p76
    %p78 = scmp.ne.s32.totalorder %s70, %s73
    %p79 = scmp.eq.s32.totalorder %s8, 0
    %p80 = por %p78, %p79
    %p81 = scmp.ne.s32.totalorder %s70, %s73
    %p82 = scmp.eq.s32.totalorder %s13, 2
    %p83 = por %p81, %p82
    %p84 = scmp.ne.s32.totalorder %s73, %s74
    %p85 = scmp.eq.s32.totalorder %s13, 0
    %p86 = por %p84, %p85
    %p87 = scmp.ne.s32.totalorder %s73, %s74
    %p88 = scmp.eq.s32.totalorder %s14, 2
    %p89 = por %p87, %p88
    %p91 = scmp.ne.s32.totalorder %s74, %s90
    %p92 = scmp.eq.s32.totalorder %s14, 0
    %p93 = por %p91, %p92
    %p94 = scmp.le.s32.totalorder 1, %s8
    %p95 = scmp.lt.s32.totalorder %s8, 4
    %p96 = pnand %p94, %p95
    %p97 = pneg %p96
    // Predicated region
    $region9: #{tpu_custom_call.1} parent=5 // pred_check
      _
    $region10: #{tpu_custom_call.1} parent=5 // pred_check_branch
      %99 = sbr.rel (%p96) target = $region12
    $region11: #{tpu_custom_call.1} parent=5 // pred_region
      %s100 = ssub.s32 %s8, 1
    $region12: #{tpu_custom_call.1} parent=5 // pred_fallthru
      _
    %p101 = scmp.lt.s32.totalorder %s8, 3
    // Predicated region
    $region13: #{tpu_custom_call.1} parent=5 // pred_check
      %p102 = pneg %p101
    $region14: #{tpu_custom_call.1} parent=5 // pred_check_branch
      %104 = sbr.rel (%p102) target = $region16
    $region15: #{tpu_custom_call.1} parent=5 // pred_region
      // Predicated region
      $region17: #{tpu_custom_call.1} parent=15 // pred_check
        %p105 = pneg %p28
      $region18: #{tpu_custom_call.1} parent=15 // pred_check_branch
        %107 = sbr.rel (%p105) target = $region20
      $region19: #{tpu_custom_call.1} parent=15 // pred_region
        %p108 = scmp.lt.s32.totalorder %s8, 2
        %s109 = scalar_select %p108, %s8, 2
        %s110 = smul.addr %s109, 8
        %s111 = scalar_lea.vmem %s0, %s110
      $region20: #{tpu_custom_call.1} parent=15 // pred_fallthru
        _
      // Predicated region
      $region21: #{tpu_custom_call.1} parent=15 // pred_check
        %p112 = pneg %p54
      $region22: #{tpu_custom_call.1} parent=15 // pred_check_branch
        %114 = sbr.rel (%p112) target = $region24
      $region23: #{tpu_custom_call.1} parent=15 // pred_region
        %p115 = scmp.lt.s32.totalorder %s8, 2
        %s116 = scalar_select %p115, %s8, 2
        %s117 = smul.addr %s116, 8
        %s118 = scalar_lea.vmem %s1, %s117
      $region24: #{tpu_custom_call.1} parent=15 // pred_fallthru
        _
    $region16: #{tpu_custom_call.1} parent=5 // pred_fallthru
      _
    %p119 = scmp.le.s32.totalorder 1, %s8
    %p120 = scmp.lt.s32.totalorder %s8, 4
    %p121 = pnand %p119, %p120
    %p122 = pneg %p121
    // Predicated region
    $region25: #{tpu_custom_call.1} parent=5 // pred_check
      _
    $region26: #{tpu_custom_call.1} parent=5 // pred_check_branch
      %124 = sbr.rel (%p121) target = $region28
    $region27: #{tpu_custom_call.1} parent=5 // pred_region
      %s125 = ssub.s32 %s8, 1
      %p126 = scmp.lt.s32.totalorder %s13, 2
      %s127 = scalar_select %p126, %s13, 2
      %s128 = smul.addr %s127, 8
      %s129 = scalar_lea.vmem %s0, %s128
      %p130 = pneg %p34
      %p131 = pneg %p31
      %p132 = scmp.lt.s32.totalorder %s13, 2
      %s133 = scalar_select %p132, %s13, 2
      %s134 = smul.addr %s133, 8
      %s135 = scalar_lea.vmem %s1, %s134
      %p136 = pneg %p60
      %p137 = pneg %p57
      %p138 = pneg %p86
      %p139 = pneg %p83
      %p140 = scmp.lt.s32.totalorder %s13, 2
      %s141 = scalar_select %p140, %s13, 2
      %s142 = smul.addr %s141, 8
      %s143 = scalar_lea.vmem %s2, %s142
      %p144 = scmp.lt.s32.totalorder %s13, 2
      %s145 = scalar_select %p144, %s13, 2
      %s146 = smul.addr %s145, 8
      %s147 = scalar_lea.vmem %s0, %s146
      %p148 = scmp.lt.s32.totalorder %s13, 2
      %s149 = scalar_select %p148, %s13, 2
      %s150 = smul.addr %s149, 8
      %s151 = scalar_lea.vmem %s1, %s150
      %p152 = scmp.lt.s32.totalorder %s13, 2
      %s153 = scalar_select %p152, %s13, 2
      %s154 = smul.addr %s153, 8
      %s155 = scalar_lea.vmem %s2, %s154
      %v156 = vld [vmem:[%s147] sm:$0xff]
      %v157 = vld [vmem:[%s151] sm:$0xff]
      %vm158 = vcmask 261120
      %v159 = vsel %vm158, %v156, -inf
      %160 = vmax.xlane.f32.xlu0 %v159
      %v161 = vpop.xlane.xlu0 %160
      %v162 = vsub.f32 %v156, %v161
      %v163 = vmul.f32 %v162, 1.442695
      %v164 = vpow.pop %v163
      %v165 = vsel %vm158, %v164, 0.0
      %166 = vadd.xlane.f32.xlu0 %v165
      %v167 = vpop.xlane.xlu0 %166
      %v168 = vlog2.pop %v167
      %v169 = vmul.f32 %v168, 0.6931472
      %v170 = vadd.f32 %v161, %v169
      %v171 = vsel %vm158, %v156, 0.0
      %172 = vadd.xlane.f32.xlu0 %v171
      %v173 = vpop.xlane.xlu0 %172
      %v174 = vsub.f32 %v173, %v157
      %176 = vrot.lane.b32.xlu0 %v157, 1
      %v177 = vpop.permute.xlu0 %176
      %v179 = vsub.f32 %v174, %v177
      %v180 = vmul.f32 %v179, 0.0033333334
      %v181 = vsub.f32 %v170, %v180
      %v182 = vmul.f32 %v157, 0.9
      %184 = vrot.lane.b32.xlu0 %v182, 1
      %v185 = vpop.permute.xlu0 %184
      %v187 = vsub.f32 %v181, %v185
      %s188 = smul.u32 %s13, 8
      %v189 = vlaneseq
      %v190 = vshrl.u32 %v189, 7
      %v191 = vstv %s188
      %v192 = vadd.s32 %v191, %v190
      %vm193 = vcmp.lt.s32.totalorder %v192, 20
      %vm194 = vcmp.gt.f32.partialorder %v157, 0.5
      %vm195 = vmand %vm193, %vm194
      %197 = vrot.lane.b32.xlu0 %v187, 1
      %v198 = vpop.permute.xlu0 %197
      %v200 = vsel %vm195, %v198, 0.0
      %202 = vrot.lane.b32.xlu0 %v200, 126
      %v203 = vpop.permute.xlu0 %202
      %vm205 = vcmask 7168
      %206 = vst.msk [vmem:[%s155] sm:$0xff] %vm205, %v203
      %p207 = scmp.lt.s32.totalorder %s13, 2
      %s208 = scalar_select %p207, %s13, 2
      %s209 = smul.addr %s208, 8
      %s210 = scalar_lea.vmem %s2, %s209
      // Predicated region
      $region29: #{tpu_custom_call.1} parent=27 // pred_check
        %p211 = pneg %p83
      $region30: #{tpu_custom_call.1} parent=27 // pred_check_branch
        %213 = sbr.rel (%p211) target = $region32
      $region31: #{tpu_custom_call.1} parent=27 // pred_region
        _
      $region32: #{tpu_custom_call.1} parent=27 // pred_fallthru
        _
    $region28: #{tpu_custom_call.1} parent=5 // pred_fallthru
      _
    %p214 = scmp.le.s32.totalorder 2, %s8
    // Predicated region
    $region33: #{tpu_custom_call.1} parent=5 // pred_check
      %p215 = pneg %p214
    $region34: #{tpu_custom_call.1} parent=5 // pred_check_branch
      %217 = sbr.rel (%p215) target = $region36
    $region35: #{tpu_custom_call.1} parent=5 // pred_region
      %s218 = ssub.s32 %s8, 2
      // Predicated region
      $region37: #{tpu_custom_call.1} parent=35 // pred_check
        %p219 = pneg %p89
      $region38: #{tpu_custom_call.1} parent=35 // pred_check_branch
        %221 = sbr.rel (%p219) target = $region40
      $region39: #{tpu_custom_call.1} parent=35 // pred_region
        %p222 = scmp.lt.s32.totalorder %s14, 2
        %s223 = scalar_select %p222, %s14, 2
        %s224 = smul.addr %s223, 8
        %s225 = scalar_lea.vmem %s2, %s224
      $region40: #{tpu_custom_call.1} parent=35 // pred_fallthru
        _
    $region36: #{tpu_custom_call.1} parent=5 // pred_fallthru
      _
  $region6: #{tpu_custom_call.1} parent=0 // loop_footer
    %s12 = sadd.s32 1, %s8
  $region7: #{tpu_custom_call.1} parent=0 // loop_footer_branch
    %7 = sbr.rel target = $region3
  $region8: #{tpu_custom_call.1} parent=0 // loop_exit
    _

</llo_original>
